<compile_context>
chip_gen: v7x
topology: tpu7x:2x2x1
jax: 0.10.0
libtpu: 0.0.40
codegen_flags: <defaults>
</compile_context>

<pallas_src>
import jax
import jax.numpy as jnp
from jax import lax
from jax.experimental import pallas as pl
from jax.experimental.pallas import tpu as pltpu


def _tanh_attention_kernel(x_ref, w_ref, v_ref, out_ref, attn_ref):
    # x_ref:   (TB, S, D)   w_ref: (D, D)  (nn.Linear weight, [out, in])
    # v_ref:   (1, D)
    # out_ref: (TB, S, D)   attn_ref: (TB, S, 1)
    tb, s, d = x_ref.shape

    x3 = x_ref[...]                                   # native dtype (bf16/f32)
    x2d = x3.reshape(tb * s, d)                       # pack sequences -> fill MXU M

    # x @ W.T on the MXU (contract x's D with weight's in_features dim),
    # f32 accumulation, tanh on the VPU/EUP.
    h = jnp.tanh(
        lax.dot_general(
            x2d, w_ref[...],
            dimension_numbers=(((1,), (1,)), ((), ())),
            preferred_element_type=jnp.float32,
        )
    ).reshape(tb, s, d)                               # (TB, S, D) f32

    # Projection onto the attention vector: VPU multiply + lane reduce
    # (replaces an N=1 MXU matmul).
    v_row = v_ref[...].astype(jnp.float32)            # (1, D)
    logits = jnp.sum(h * v_row, axis=-1, keepdims=True)   # (TB, S, 1) f32

    # Softmax over the sequence axis (dim=1 in the PyTorch module), per sequence.
    m = jnp.max(logits, axis=1, keepdims=True)
    e = jnp.exp(logits - m)
    denom = jnp.sum(e, axis=1, keepdims=True)
    attn = e * pl.reciprocal(denom, approx=False)     # (TB, S, 1) f32

    attn_ref[...] = attn.astype(attn_ref.dtype)

    # Fold the seq-len scale into the (TB,S,1) vector before broadcasting.
    attn_scaled = (attn * jnp.float32(s)).astype(x3.dtype)
    out_ref[...] = (x3 * attn_scaled).astype(out_ref.dtype)


def _choose_batch_tile(batch, seq_len, target_rows=256):
    """Largest divisor of `batch` whose packed row count tb*seq <= target_rows."""
    best = 1
    for tb in range(1, batch + 1):
        if batch % tb == 0 and tb * seq_len <= target_rows:
            best = tb
    return best


def tanh_attention(x, weight, vector):
    """x: [B, S, D], weight: [D, D] (nn.Linear weight, [out,in]), vector: [D]."""
    B, S, D = x.shape
    v = vector.reshape(1, D)
    TB = _choose_batch_tile(B, S)

    # VMEM estimate for the per-step working set (double-buffered x/out blocks,
    # weight, f32 intermediates) -> raise the scoped limit only when needed.
    x_isz = jnp.dtype(x.dtype).itemsize
    w_isz = jnp.dtype(weight.dtype).itemsize
    vmem_est = (4 * TB * S * D * x_isz          # x + out, 2 buffers each
                + 2 * D * D * w_isz             # weight (pipelined)
                + 4 * TB * S * D                # f32 h intermediate
                + 4 * TB * S * x_isz)           # attn blocks
    vmem_est = int(vmem_est * 2)                # headroom
    cp_kwargs = dict(dimension_semantics=("parallel",))
    if vmem_est > (32 << 20):
        # TODO(synk): WSI-scale S on v7x (64 MiB VMEM) should S-tile with an
        # online softmax instead of holding the whole sequence per step.
        cp_kwargs["vmem_limit_bytes"] = min(vmem_est, 96 << 20)

    out, attn = pl.pallas_call(
        _tanh_attention_kernel,
        out_shape=(
            jax.ShapeDtypeStruct((B, S, D), x.dtype),
            jax.ShapeDtypeStruct((B, S, 1), x.dtype),
        ),
        grid_spec=pltpu.PrefetchScalarGridSpec(
            num_scalar_prefetch=0,
            grid=(B // TB,),
            in_specs=[
                pl.BlockSpec((TB, S, D), lambda b: (b, 0, 0)),
                pl.BlockSpec((D, D), lambda b: (0, 0)),
                pl.BlockSpec((1, D), lambda b: (0, 0)),
            ],
            out_specs=[
                pl.BlockSpec((TB, S, D), lambda b: (b, 0, 0)),
                pl.BlockSpec((TB, S, 1), lambda b: (b, 0, 0)),
            ],
        ),
        compiler_params=pltpu.CompilerParams(**cp_kwargs),
    )(x, weight, v)
    return out, attn


def tanh_attention_ref(x, weight, vector):
    """Pure-JAX reference matching the PyTorch forward."""
    logits = jnp.tanh(jnp.einsum("bsd,ed->bse", x, weight)) @ vector[:, None]
    attn = jax.nn.softmax(logits, axis=1)
    out = x * attn * x.shape[1]
    return out, attn


if __name__ == "__main__":
    # Small shapes consistent with the module: batch=2, seq=8, dim=32.
    B, S, D = 2, 8, 32
    key = jax.random.PRNGKey(0)
    kx, kw, kv = jax.random.split(key, 3)

    x = jax.random.normal(kx, (B, S, D), dtype=jnp.float32)
    # Deterministic synthetic parameters (module __init__ shapes: W (D,D), v (D,)).
    # Note: the PyTorch module initializes `vector` to zeros; we use non-zero
    # deterministic values so the softmax path is actually exercised.
    weight = jax.random.normal(kw, (D, D), dtype=jnp.float32) * 0.05
    vector = jax.random.normal(kv, (D,), dtype=jnp.float32) * 0.5

    out, attn = tanh_attention(x, weight, vector)
    out = jax.block_until_ready(out)
    attn = jax.block_until_ready(attn)

    out_ref, attn_ref = tanh_attention_ref(x, weight, vector)
    assert out.shape == (B, S, D) and attn.shape == (B, S, 1)
    assert jnp.allclose(out, out_ref, atol=1e-5, rtol=1e-5)
    assert jnp.allclose(attn, attn_ref, atol=1e-5, rtol=1e-5)

    print("KERNEL_OK")
</pallas_src>

<mosaic_0001>
module attributes {stable_mosaic.version = 11 : i64} {
  func.func @_tanh_attention_kernel(%arg0: i32, %arg1: memref<2x8x32xf32, #tpu.memory_space<vmem>>, %arg2: memref<32x32xf32, #tpu.memory_space<vmem>>, %arg3: memref<1x32xf32, #tpu.memory_space<vmem>>, %arg4: memref<2x8x32xf32, #tpu.memory_space<vmem>>, %arg5: memref<2x8x1xf32, #tpu.memory_space<vmem>>) attributes {dimension_semantics = [#tpu.dimension_semantics<parallel>], iteration_bounds = array<i64: 1>, scalar_prefetch = 0 : i64, scratch_operands = 0 : i64, tpu.core_type = #tpu.core_type<tc>, window_params = [{transform_indices = @transform_0, window_bounds = array<i64: 2, 8, 32>}, {pipeline_mode = #tpu.pipeline_mode<synchronous>, transform_indices = @transform_1, window_bounds = array<i64: 32, 32>}, {pipeline_mode = #tpu.pipeline_mode<synchronous>, transform_indices = @transform_2, window_bounds = array<i64: 1, 32>}, {transform_indices = @transform_3, window_bounds = array<i64: 2, 8, 32>}, {transform_indices = @transform_4, window_bounds = array<i64: 2, 8, 1>}]} {
    %c0 = arith.constant 0 : index
    %c0_0 = arith.constant 0 : index
    %c0_1 = arith.constant 0 : index
    %0 = vector.load %arg1[%c0, %c0_0, %c0_1] : memref<2x8x32xf32, #tpu.memory_space<vmem>>, vector<2x8x32xf32>
    %1 = vector.shape_cast %0 : vector<2x8x32xf32> to vector<16x32xf32>
    %c0_2 = arith.constant 0 : index
    %c0_3 = arith.constant 0 : index
    %2 = vector.load %arg2[%c0_2, %c0_3] : memref<32x32xf32, #tpu.memory_space<vmem>>, vector<32x32xf32>
    %cst = arith.constant dense<0.000000e+00> : vector<16x32xf32>
    %3 = tpu.matmul %1, %2, %cst {dimension_numbers = #tpu.dot_dimension_numbers<[1], [1], [0], [0], [0, 0, 1, 0], [], []>} : vector<16x32xf32>, vector<32x32xf32>, vector<16x32xf32> -> vector<16x32xf32>
    %4 = math.tanh %3 : vector<16x32xf32>
    %5 = vector.shape_cast %4 : vector<16x32xf32> to vector<2x8x32xf32>
    %c0_4 = arith.constant 0 : index
    %c0_5 = arith.constant 0 : index
    %6 = vector.load %arg3[%c0_4, %c0_5] : memref<1x32xf32, #tpu.memory_space<vmem>>, vector<1x32xf32>
    %7 = vector.shape_cast %6 : vector<1x32xf32> to vector<1x1x32xf32>
    %8 = vector.broadcast %7 : vector<1x1x32xf32> to vector<2x8x32xf32>
    %9 = arith.mulf %5, %8 : vector<2x8x32xf32>
    %cst_6 = arith.constant dense<0.000000e+00> : vector<2x8xf32>
    %10 = vector.multi_reduction <add>, %9, %cst_6 [2] : vector<2x8x32xf32> to vector<2x8xf32>
    %11 = vector.shape_cast %10 : vector<2x8xf32> to vector<2x8x1xf32>
    %cst_7 = arith.constant dense<0xFF800000> : vector<2x1xf32>
    %12 = vector.multi_reduction <maximumf>, %11, %cst_7 [1] : vector<2x8x1xf32> to vector<2x1xf32>
    %13 = vector.shape_cast %12 : vector<2x1xf32> to vector<2x1x1xf32>
    %14 = vector.broadcast %13 : vector<2x1x1xf32> to vector<2x8x1xf32>
    %15 = arith.subf %11, %14 : vector<2x8x1xf32>
    %16 = math.exp %15 : vector<2x8x1xf32>
    %cst_8 = arith.constant dense<0.000000e+00> : vector<2x1xf32>
    %17 = vector.multi_reduction <add>, %16, %cst_8 [1] : vector<2x8x1xf32> to vector<2x1xf32>
    %18 = vector.shape_cast %17 : vector<2x1xf32> to vector<2x1x1xf32>
    %19 = tpu.reciprocal %18 : vector<2x1x1xf32> -> vector<2x1x1xf32>
    %20 = vector.broadcast %19 : vector<2x1x1xf32> to vector<2x8x1xf32>
    %21 = arith.mulf %16, %20 : vector<2x8x1xf32>
    %c0_9 = arith.constant 0 : index
    %c0_10 = arith.constant 0 : index
    %c0_11 = arith.constant 0 : index
    %22 = vector.load %arg5[%c0_9, %c0_10, %c0_11] : memref<2x8x1xf32, #tpu.memory_space<vmem>>, vector<2x8x1xf32>
    tpu.vector_store %arg5[%c0_9, %c0_10, %c0_11], %21 {strides = array<i32>} : memref<2x8x1xf32, #tpu.memory_space<vmem>>, vector<2x8x1xf32>,
    %cst_12 = arith.constant 8.000000e+00 : f32
    %23 = vector.broadcast %cst_12 : f32 to vector<2x8x1xf32>
    %24 = arith.mulf %21, %23 : vector<2x8x1xf32>
    %25 = vector.broadcast %24 : vector<2x8x1xf32> to vector<2x8x32xf32>
    %26 = arith.mulf %0, %25 : vector<2x8x32xf32>
    %c0_13 = arith.constant 0 : index
    %c0_14 = arith.constant 0 : index
    %c0_15 = arith.constant 0 : index
    %27 = vector.load %arg4[%c0_13, %c0_14, %c0_15] : memref<2x8x32xf32, #tpu.memory_space<vmem>>, vector<2x8x32xf32>
    tpu.vector_store %arg4[%c0_13, %c0_14, %c0_15], %26 {strides = array<i32>} : memref<2x8x32xf32, #tpu.memory_space<vmem>>, vector<2x8x32xf32>,
    return
  }
  func.func @transform_0(%arg0: i32) -> (i32, i32, i32) {
    %c0_i32 = arith.constant 0 : i32
    %c0_i32_0 = arith.constant 0 : i32
    %c0_i32_1 = arith.constant 0 : i32
    return %arg0, %c0_i32, %c0_i32_0 : i32, i32, i32
  }
  func.func @transform_1(%arg0: i32) -> (i32, i32) {
    %c0_i32 = arith.constant 0 : i32
    %c0_i32_0 = arith.constant 0 : i32
    %c0_i32_1 = arith.constant 0 : i32
    return %c0_i32, %c0_i32_0 : i32, i32
  }
  func.func @transform_2(%arg0: i32) -> (i32, i32) {
    %c0_i32 = arith.constant 0 : i32
    %c0_i32_0 = arith.constant 0 : i32
    %c0_i32_1 = arith.constant 0 : i32
    return %c0_i32, %c0_i32_0 : i32, i32
  }
  func.func @transform_3(%arg0: i32) -> (i32, i32, i32) {
    %c0_i32 = arith.constant 0 : i32
    %c0_i32_0 = arith.constant 0 : i32
    %c0_i32_1 = arith.constant 0 : i32
    return %arg0, %c0_i32, %c0_i32_0 : i32, i32, i32
  }
  func.func @transform_4(%arg0: i32) -> (i32, i32, i32) {
    %c0_i32 = arith.constant 0 : i32
    %c0_i32_0 = arith.constant 0 : i32
    %c0_i32_1 = arith.constant 0 : i32
    return %arg0, %c0_i32, %c0_i32_0 : i32, i32, i32
  }
}

</mosaic_0001>

<llo_original>
// kernel: tpu_custom_call.1
$region0: #{tpu_custom_call.1}
  #allocation0 [shape = 'u32[]', space=smem, size = 0x4, offset = 0x4, fixed_abs, tag = 'smem constant byte address 0x4 - core index']
  #allocation1 [shape = 'u32[144,128]{1,0:T(1,128)}', space=vmem, size = 0x12000, scoped, tag = 'internal scratch']
  %s0 = inlined_call_operand.hbm [shape: f32[2,8,32], index: 0, kind: input, shape index: {}]
  %s1 = inlined_call_operand.hbm [shape: f32[32,32], index: 1, kind: input, shape index: {}]
  %s2 = inlined_call_operand.vmem [shape: f32[1,32], index: 2, kind: input, shape index: {}]
  %s3 = inlined_call_operand.hbm [shape: f32[2,8,32], index: 3, kind: output, shape index: {0}]
  %s4 = inlined_call_operand.vmem [shape: f32[2,8,1], index: 4, kind: output, shape index: {1}]
  %5 = xla_tuple %s3, %s4
  %s6 = sld [smem:[#allocation0]]
  $region38: #{tpu_custom_call.1} parent=0
    _
  %s8 = ssub.s32 1, %s6
  %s9 = scalar_select 0, %s8, %s6
  $region1: #{tpu_custom_call.1} parent=0
    #allocation2 [shape = 'u8[8192]{0}', space=vmem, size = 0x2000, scoped, tag = 'input window, operand 0, single buffered']
    #allocation3 [shape = 's32[1]{0}', space=sflag, size = 0x4, scoped, tag = 'scoped memory for tpu_custom_call.1']
    #allocation4 [shape = 's32[1]{0}', space=sflag, size = 0x4, scoped, tag = 'scoped memory for tpu_custom_call.1']
    #allocation5 [shape = 'u8[16384]{0}', space=vmem, size = 0x4000, scoped, tag = 'input window, operand 1, single buffered']
    #allocation6 [shape = 's32[1]{0}', space=sflag, size = 0x4, scoped, tag = 'scoped memory for tpu_custom_call.1']
    #allocation7 [shape = 'u8[8192]{0}', space=vmem, size = 0x2000, scoped, tag = 'output window, operand 0, single buffered']
    %10 = vsyncpa [#allocation3], 0
    %11 = vsyncpa [#allocation6], 0
    %12 = vsyncpa [#allocation4], 0
    // Predicated region
    $region2: #{tpu_custom_call.1} parent=1 // pred_check
      _
    $region3: #{tpu_custom_call.1} parent=1 // pred_check_branch
      %14 = sbr.rel (0) target = $region5
    $region4: #{tpu_custom_call.1} parent=1 // pred_region
      %s16 = ssub.s32 256, 256
      %17 = vsyncadd [#allocation3], %s16
      %s18 = sshll.u32 [#allocation2], 4
      %s19 = int_to_ptr.vmem [resolvable:$true] %s18
      %24 = dma.hbm_to_vmem [thread:$0]  %s0, 256, %s19, [#allocation3], 128, 128, 8
    $region5: #{tpu_custom_call.1} parent=1 // pred_fallthru
      _
    // Predicated region
    $region6: #{tpu_custom_call.1} parent=1 // pred_check
      _
    $region7: #{tpu_custom_call.1} parent=1 // pred_check_branch
      %26 = sbr.rel (0) target = $region9
    $region8: #{tpu_custom_call.1} parent=1 // pred_region
      %s28 = ssub.s32 512, 512
      %29 = vsyncadd [#allocation6], %s28
      %s30 = sshll.u32 [#allocation5], 4
      %s31 = int_to_ptr.vmem [resolvable:$true] %s30
      %36 = dma.hbm_to_vmem [thread:$0]  %s1, 512, %s31, [#allocation6], 128, 128, 8
    $region9: #{tpu_custom_call.1} parent=1 // pred_fallthru
      _
    // Predicated region
    $region10: #{tpu_custom_call.1} parent=1 // pred_check
      _
    $region11: #{tpu_custom_call.1} parent=1 // pred_check_branch
      %38 = sbr.rel (0) target = $region13
    $region12: #{tpu_custom_call.1} parent=1 // pred_region
      _
    $region13: #{tpu_custom_call.1} parent=1 // pred_fallthru
      _
    // Predicated region
    $region14: #{tpu_custom_call.1} parent=1 // pred_check
      _
    $region15: #{tpu_custom_call.1} parent=1 // pred_check_branch
      %40 = sbr.rel (0) target = $region17
    $region16: #{tpu_custom_call.1} parent=1 // pred_region
      %41 = dma.done [#allocation3], 256
    $region17: #{tpu_custom_call.1} parent=1 // pred_fallthru
      _
    // Predicated region
    $region18: #{tpu_custom_call.1} parent=1 // pred_check
      _
    $region19: #{tpu_custom_call.1} parent=1 // pred_check_branch
      %43 = sbr.rel (0) target = $region21
    $region20: #{tpu_custom_call.1} parent=1 // pred_region
      %44 = dma.done [#allocation6], 512
    $region21: #{tpu_custom_call.1} parent=1 // pred_fallthru
      _
    %v45 = vld [vmem:[#allocation2] sm:$0xff]
    %v46 = vld [vmem:[#allocation2 + $0x8] sm:$0xff]
    %v47 = vld [vmem:[#allocation5] sm:$0xff]
    %v48 = vld [vmem:[#allocation5 + $0x8] sm:$0xff]
    %v49 = vld [vmem:[#allocation5 + $0x10] sm:$0xff]
    %v50 = vld [vmem:[#allocation5 + $0x18] sm:$0xff]
    %vm51 = vcmask 261120
    %v53 = vsel %vm51, %v45, 0
    %v56 = vsel %vm51, %v46, 0
    %v59 = vsel %vm51, %v47, 0
    %v62 = vsel %vm51, %v48, 0
    %v65 = vsel %vm51, %v49, 0
    %v68 = vsel %vm51, %v50, 0
    %70 = vmatprep.subr.mxu0 0.0
    %71 = vmatpush1.xpose.msra.mxu0 %v59
    %72 = vmatprep.subr.mxu0 0.0
    %73 = vmatpush1.xpose.msra.mxu0 %v62
    %74 = vmatprep.subr.mxu0 0.0
    %75 = vmatpush1.xpose.msra.mxu0 %v65
    %76 = vmatprep.subr.mxu0 0.0
    %77 = vmatpush1.xpose.msra.mxu0 %v68
    %78 = vmatprep.subr.mxu0 0.0
    %79 = vmatpush1.xpose.msra.mxu0 0.0
    %80 = vmatprep.subr.mxu0 0.0
    %81 = vmatpush1.xpose.msra.mxu0 0.0
    %82 = vmatprep.subr.mxu0 0.0
    %83 = vmatpush1.xpose.msra.mxu0 0.0
    %84 = vmatprep.subr.mxu0 0.0
    %85 = vmatpush1.xpose.msra.mxu0 0.0
    %86 = vmatprep.subr.mxu0 0.0
    %87 = vmatpush1.xpose.msra.mxu0 0.0
    %88 = vmatprep.subr.mxu0 0.0
    %89 = vmatpush1.xpose.msra.mxu0 0.0
    %90 = vmatprep.subr.mxu0 0.0
    %91 = vmatpush1.xpose.msra.mxu0 0.0
    %92 = vmatprep.subr.mxu0 0.0
    %93 = vmatpush1.xpose.msra.mxu0 0.0
    %94 = vmatprep.subr.mxu0 0.0
    %95 = vmatpush1.xpose.msra.mxu0 0.0
    %96 = vmatprep.subr.mxu0 0.0
    %97 = vmatpush1.xpose.msra.mxu0 0.0
    %98 = vmatprep.subr.mxu0 0.0
    %99 = vmatpush1.xpose.msra.mxu0 0.0
    %100 = vmatprep.subr.mxu0 0.0
    %101 = vmatpush1.xpose.msra.mxu0 0.0
    %102 = vmatprep.subr.mxu0 0.0
    %103 = vmatpush1.xpose.msra.mxu0 0.0
    %104 = vmatprep.subr.mxu0 0.0
    %105 = vmatpush1.xpose.msra.mxu0 0.0
    %106 = vmatprep.subr.mxu0 0.0
    %107 = vmatpush1.xpose.msra.mxu0 0.0
    %108 = vmatprep.subr.mxu0 0.0
    %109 = vmatpush1.xpose.msra.mxu0 0.0
    %110 = vmatprep.subr.mxu0 0.0
    %111 = vmatpush1.xpose.msra.mxu0 0.0
    %112 = vmatprep.subr.mxu0 0.0
    %113 = vmatpush1.xpose.msra.mxu0 0.0
    %114 = vmatprep.subr.mxu0 0.0
    %115 = vmatpush1.xpose.msra.mxu0 0.0
    %116 = vmatprep.subr.mxu0 0.0
    %117 = vmatpush1.xpose.msra.mxu0 0.0
    %118 = vmatprep.subr.mxu0 0.0
    %119 = vmatpush1.xpose.msra.mxu0 0.0
    %120 = vmatprep.subr.mxu0 0.0
    %121 = vmatpush1.xpose.msra.mxu0 0.0
    %122 = vmatprep.subr.mxu0 0.0
    %123 = vmatpush1.xpose.msra.mxu0 0.0
    %124 = vmatprep.subr.mxu0 0.0
    %125 = vmatpush1.xpose.msra.mxu0 0.0
    %126 = vmatprep.subr.mxu0 0.0
    %127 = vmatpush1.xpose.msra.mxu0 0.0
    %128 = vmatprep.subr.mxu0 0.0
    %129 = vmatpush1.xpose.msra.mxu0 0.0
    %130 = vmatprep.subr.mxu0 0.0
    %131 = vmatpush1.xpose.msra.mxu0 0.0
    %132 = vmatprep.subr.mxu0 0.0
    %133 = vmatpush1.xpose.msra.mxu0 0.0
    %134 = vmatprep.mubr.f32.mxu0 0.0
    %135 = vmatmul.mubr.f32.gmra.mrb[0].mxu0 %v53
    %v136 = vpop.f32.mrb[0].mxu0
    %v137 = vadd.f32 0.0, %v136
    %v138 = vpop.f32.mrb[0].mxu0
    %139 = vmatprep.mubr.f32.mxu0 0.0
    %140 = vmatmul.mubr.f32.gmra.mrb[0].mxu0 %v56
    %v141 = vpop.f32.mrb[0].mxu0
    %v142 = vadd.f32 0.0, %v141
    %v143 = vpop.f32.mrb[0].mxu0
    %144 = vdwg.mxu0
    %v145 = vtanh.pop %v137
    %v146 = vtanh.pop %v142
    %v147 = vld [vmem:[%s2] sm:$0x1]
    %v149 = vlaneseq
    %v150 = vshrl.u32 %v149, 7
    %v151 = vsub.s32 0, %v150
    %v152 = vrot.slane %v147, %v151
    %v154 = vmul.f32 %v145, %v152
    %v155 = vmul.f32 %v146, %v152
    %v156 = vsel %vm51, %v154, 0.0
    %157 = vadd.xlane.f32.xlu0 %v156
    %v158 = vpop.xlane.xlu0 %157
    %v159 = vsel %vm51, %v155, 0.0
    %160 = vadd.xlane.f32.xlu0 %v159
    %v161 = vpop.xlane.xlu0 %160
    %v162 = vrot.slane %v158, 4
    %v163 = vmax.f32 %v158, %v162
    %v164 = vrot.slane %v163, 2
    %v165 = vmax.f32 %v163, %v164
    %v166 = vrot.slane %v165, 1
    %v167 = vmax.f32 %v165, %v166
    %v168 = vrot.slane %v161, 4
    %v169 = vmax.f32 %v161, %v168
    %v170 = vrot.slane %v169, 2
    %v171 = vmax.f32 %v169, %v170
    %v172 = vrot.slane %v171, 1
    %v173 = vmax.f32 %v171, %v172
    %v174 = vsub.f32 %v158, %v167
    %v175 = vsub.f32 %v161, %v173
    %v176 = vmul.f32 %v174, 1.442695
    %v177 = vpow.pop %v176
    %v178 = vmul.f32 %v175, 1.442695
    %v179 = vpow.pop %v178
    %v180 = vrot.slane %v177, 4
    %v181 = vadd.f32 %v177, %v180
    %v182 = vrot.slane %v181, 2
    %v183 = vadd.f32 %v181, %v182
    %v184 = vrot.slane %v183, 1
    %v185 = vadd.f32 %v183, %v184
    %v186 = vrot.slane %v179, 4
    %v187 = vadd.f32 %v179, %v186
    %v188 = vrot.slane %v187, 2
    %v189 = vadd.f32 %v187, %v188
    %v190 = vrot.slane %v189, 1
    %v191 = vadd.f32 %v189, %v190
    %v192 = vrcp.pop %v185
    %v193 = vrcp.pop %v191
    %v194 = vmul.f32 %v177, %v192
    %v195 = vmul.f32 %v179, %v193
    %vm196 = vcmask 7168
    %197 = vst.msk [vmem:[%s4] sm:$0xff] %vm196, %v194
    %198 = vst.msk [vmem:[%s4 + $0x8] sm:$0xff] %vm196, %v195
    %v199 = vmul.f32 %v194, 8.0
    %v200 = vmul.f32 %v195, 8.0
    %v201 = vmul.f32 %v45, %v199
    %v202 = vmul.f32 %v46, %v200
    %203 = vst.msk [vmem:[#allocation7] sm:$0xff] %vm51, %v201
    %204 = vst.msk [vmem:[#allocation7 + $0x8] sm:$0xff] %vm51, %v202
    // Predicated region
    $region22: #{tpu_custom_call.1} parent=1 // pred_check
      _
    $region23: #{tpu_custom_call.1} parent=1 // pred_check_branch
      %206 = sbr.rel (0) target = $region25
    $region24: #{tpu_custom_call.1} parent=1 // pred_region
      %s208 = ssub.s32 256, 256
      %209 = vsyncadd [#allocation4], %s208
      %s210 = sshll.u32 [#allocation7], 4
      %s211 = int_to_ptr.vmem [resolvable:$true] %s210
      %216 = dma.vmem_to_hbm [thread:$0]  %s211, 256, %s3, [#allocation4], 128, 128, 8
    $region25: #{tpu_custom_call.1} parent=1 // pred_fallthru
      _
    // Predicated region
    $region26: #{tpu_custom_call.1} parent=1 // pred_check
      _
    $region27: #{tpu_custom_call.1} parent=1 // pred_check_branch
      %218 = sbr.rel (0) target = $region29
    $region28: #{tpu_custom_call.1} parent=1 // pred_region
      _
    $region29: #{tpu_custom_call.1} parent=1 // pred_fallthru
      _
    // Predicated region
    $region30: #{tpu_custom_call.1} parent=1 // pred_check
      _
    $region31: #{tpu_custom_call.1} parent=1 // pred_check_branch
      %220 = sbr.rel (0) target = $region33
    $region32: #{tpu_custom_call.1} parent=1 // pred_region
      %221 = dma.done [#allocation4], 256
    $region33: #{tpu_custom_call.1} parent=1 // pred_fallthru
      _
    // Predicated region
    $region34: #{tpu_custom_call.1} parent=1 // pred_check
      _
    $region35: #{tpu_custom_call.1} parent=1 // pred_check_branch
      %223 = sbr.rel (0) target = $region37
    $region36: #{tpu_custom_call.1} parent=1 // pred_region
      _
    $region37: #{tpu_custom_call.1} parent=1 // pred_fallthru
      _
    %224 = vsyncpa [#allocation3], 1
    %225 = vsyncpa [#allocation6], 1
    %226 = vsyncpa [#allocation4], 1

</llo_original>
